<compile_context>
chip_gen: v7x
topology: tpu7x:2x2x1
jax: 0.10.0
libtpu: 0.0.40
codegen_flags: <defaults>
</compile_context>

<pallas_src>
import jax
import jax.numpy as jnp
from jax.experimental import pallas as pl
from jax.experimental.pallas import tpu as pltpu


def _exp_decay_kernel(q_tok_ref, k_tok_ref, wl_ref, wq_ref, wg_ref, wo_ref,
                      o_ref, acc_ref):
    """One (batch, q_block, kv_block) step of the fused forward.

    q_tok_ref: (1, blk_q, dim)  query-side tokens (native dtype)
    k_tok_ref: (1, blk_k, dim)  key-side tokens   (native dtype)
    wl_ref:    (1, dim)         lambda_matrix weight
    wq_ref:    (dim, dim)       quantity_matrix weight, pre-transposed (W^T)
    wg_ref:    (dim, dim)       gate_matrix weight,     pre-transposed (W^T)
    wo_ref:    (dim, dim)       output_matrix weight,   pre-transposed (W^T)
    o_ref:     (1, blk_q, dim)  output block (written at the last kv step)
    acc_ref:   (blk_q, dim)     f32 accumulator for `mixed = decay @ quantities`
    """
    qi = pl.program_id(1)
    ki = pl.program_id(2)
    last_k = pl.num_programs(2) - 1

    blk_q = q_tok_ref.shape[1]
    blk_k = k_tok_ref.shape[1]

    @pl.when(ki == 0)
    def _init():
        acc_ref[...] = jnp.zeros_like(acc_ref)

    # Causal block skip: kv blocks strictly above the block diagonal contribute
    # nothing (decay == 0 there), so skip the exp + both matmuls entirely.
    @pl.when(ki <= qi)
    def _accumulate():
        toks_k = k_tok_ref[0]                                    # (blk_k, dim)

        # negative lambdas for this key block as a (1, blk_k) row:
        #   log(sigmoid(tokens_k @ W_lambda^T))
        # computed with a last-dim/last-dim contraction (no tokens transpose).
        logits = jax.lax.dot_general(
            wl_ref[...], toks_k,
            dimension_numbers=(((1,), (1,)), ((), ())),
            preferred_element_type=jnp.float32)                  # (1, blk_k)
        # Stable log-sigmoid: never -inf for finite logits (fixes NaN on the
        # diagonal where time == 0).
        neg_lam = jnp.minimum(logits, 0.0) - jnp.log(
            1.0 + jnp.exp(-jnp.abs(logits)))                     # (1, blk_k) <= 0

        # time[i, j] = max(i - j, 0); mask = (i >= j); one iota difference.
        row = qi * blk_q + jax.lax.broadcasted_iota(
            jnp.int32, (blk_q, blk_k), 0)
        col = ki * blk_k + jax.lax.broadcasted_iota(
            jnp.int32, (blk_q, blk_k), 1)
        d = row - col
        t = jnp.maximum(d, 0).astype(jnp.float32)
        decay = jnp.where(d >= 0, jnp.exp(neg_lam * t), 0.0)     # (blk_q, blk_k)

        # quantities for this key block, MXU in the native token dtype,
        # accumulation in f32.
        quantities = jnp.dot(toks_k, wq_ref[...],
                             preferred_element_type=jnp.float32)  # (blk_k, dim)
        acc_ref[...] += jnp.dot(decay.astype(toks_k.dtype),
                                quantities.astype(toks_k.dtype),
                                preferred_element_type=jnp.float32)

    @pl.when(ki == last_k)
    def _finalize():
        toks_q = q_tok_ref[0]                                     # (blk_q, dim)
        mixed = acc_ref[...]                                      # f32
        silu = mixed * jax.nn.sigmoid(mixed)                      # f32 elementwise
        out = jnp.dot(silu.astype(toks_q.dtype), wo_ref[...],
                      preferred_element_type=jnp.float32)
        gate = jnp.dot(toks_q, wg_ref[...],
                       preferred_element_type=jnp.float32)
        o_ref[0] = (out * gate).astype(o_ref.dtype)


def _round_up(x, m):
    return ((x + m - 1) // m) * m


def _vmem_bytes_estimate(blk, dim, itemsize):
    """Conservative per-step VMEM footprint for block size `blk`."""
    # Double-buffered pipelined blocks: q tokens, kv tokens, output block.
    blocks = 2 * (3 * blk * dim) * itemsize
    # Weight blocks (constant index_map; DMA'd once but still 2 buffers each).
    weights = 2 * (3 * dim * dim + dim) * itemsize
    # f32 accumulator scratch.
    acc = 4 * blk * dim
    # In-kernel f32 temporaries: iota diff / time / decay tile, quantities,
    # mixed, silu, projection outputs.
    temps = 4 * (3 * blk * blk + 6 * blk * dim)
    return blocks + weights + acc + temps


def _pick_block(n8, dim, itemsize, vmem_budget):
    blk = min(512, n8)
    blk = max(8, _round_up(blk, 8))
    while blk > 8 and _vmem_bytes_estimate(blk, dim, itemsize) > vmem_budget:
        blk = max(8, _round_up(blk // 2, 8))
    return blk


def exponential_decay(tokens, w_lambda, w_quantity, w_gate, w_output):
    """ExponentialDecay.forward (context disabled) via a fused Pallas kernel."""
    orig_shape = tokens.shape
    n, dim = orig_shape[-2], orig_shape[-1]
    b = 1
    for s in orig_shape[:-2]:
        b *= s
    tokens3 = tokens.reshape(b, n, dim)
    dtype = tokens3.dtype
    itemsize = jnp.dtype(dtype).itemsize

    # Generation-aware VMEM budget: ~75% of physical VMEM (48 MiB on v7x's
    # 64 MiB; 96 MiB on v5e/v6e's 128 MiB), with a safe fallback.
    try:
        vmem_cap = int(pltpu.get_tpu_info().vmem_capacity_bytes)
    except Exception:
        vmem_cap = 64 * 1024 * 1024
    vmem_budget = int(0.75 * vmem_cap)

    # Pick the sequence block size so the estimated footprint fits the budget,
    # then zero-pad the sequence to a multiple of the block (padded keys are
    # masked by causality; padded query rows are sliced off).
    n8 = _round_up(max(n, 8), 8)
    blk = _pick_block(n8, dim, itemsize, vmem_budget)
    n_pad = _round_up(n8, blk)
    if n_pad != n:
        tokens3 = jnp.pad(tokens3, ((0, 0), (0, n_pad - n), (0, 0)))

    # nn.Linear computes x @ W^T; pre-transpose once in the wrapper and keep
    # weights in the token dtype so the MXU runs at native (e.g. bf16) rate.
    wl = jnp.asarray(w_lambda, dtype=dtype).reshape(1, dim)
    wq_t = jnp.asarray(w_quantity, dtype=dtype).T
    wg_t = jnp.asarray(w_gate, dtype=dtype).T
    wo_t = jnp.asarray(w_output, dtype=dtype).T

    nq = n_pad // blk
    nk = n_pad // blk

    out = pl.pallas_call(
        _exp_decay_kernel,
        out_shape=jax.ShapeDtypeStruct((b, n_pad, dim), dtype),
        grid_spec=pltpu.PrefetchScalarGridSpec(
            num_scalar_prefetch=0,
            grid=(b, nq, nk),                                    # kv axis last
            in_specs=[
                pl.BlockSpec((1, blk, dim), lambda bi, qi, ki: (bi, qi, 0)),
                pl.BlockSpec((1, blk, dim), lambda bi, qi, ki: (bi, ki, 0)),
                pl.BlockSpec((1, dim), lambda bi, qi, ki: (0, 0)),
                pl.BlockSpec((dim, dim), lambda bi, qi, ki: (0, 0)),
                pl.BlockSpec((dim, dim), lambda bi, qi, ki: (0, 0)),
                pl.BlockSpec((dim, dim), lambda bi, qi, ki: (0, 0)),
            ],
            out_specs=pl.BlockSpec((1, blk, dim), lambda bi, qi, ki: (bi, qi, 0)),
            scratch_shapes=[pltpu.VMEM((blk, dim), jnp.float32)],
        ),
        compiler_params=pltpu.CompilerParams(
            dimension_semantics=("parallel", "parallel", "arbitrary"),
            vmem_limit_bytes=vmem_budget,
        ),
    )(tokens3, tokens3, wl, wq_t, wg_t, wo_t)

    return out[:, :n, :].reshape(orig_shape)


def exponential_decay_ref(tokens, w_lambda, w_quantity, w_gate, w_output):
    """Pure-JAX reference mirroring the PyTorch forward."""
    n = tokens.shape[-2]
    time = jnp.cumsum(jnp.tril(jnp.ones((n, n), jnp.float32), k=-1), axis=-2)
    neg_lambda = jnp.swapaxes(
        jnp.log(jax.nn.sigmoid(tokens @ w_lambda.T)), -1, -2)    # (..., 1, n)
    decay = jnp.tril(jnp.exp(neg_lambda * time))                 # (..., n, n)
    quantities = tokens @ w_quantity.T
    mixed = decay @ quantities
    silu = mixed * jax.nn.sigmoid(mixed)
    return (silu @ w_output.T) * (tokens @ w_gate.T)


if __name__ == "__main__":
    batch, seq, dim = 2, 8, 32

    key = jax.random.PRNGKey(0)
    k_tok, k_l, k_q, k_g, k_o = jax.random.split(key, 5)
    scale = 1.0 / float(dim) ** 0.5
    tokens = jax.random.normal(k_tok, (batch, seq, dim), dtype=jnp.float32)
    w_lambda = jax.random.uniform(k_l, (1, dim), jnp.float32, -scale, scale)
    w_quantity = jax.random.uniform(k_q, (dim, dim), jnp.float32, -scale, scale)
    w_gate = jax.random.uniform(k_g, (dim, dim), jnp.float32, -scale, scale)
    w_output = jax.random.uniform(k_o, (dim, dim), jnp.float32, -scale, scale)

    # f32 correctness vs the pure-JAX reference.
    out = jax.block_until_ready(
        exponential_decay(tokens, w_lambda, w_quantity, w_gate, w_output))
    ref = exponential_decay_ref(tokens, w_lambda, w_quantity, w_gate, w_output)
    assert out.shape == tokens.shape
    assert jnp.allclose(out, ref, atol=2e-3, rtol=2e-3), "f32 mismatch"

    # Sequence length that is not a multiple of the block exercises padding.
    seq2 = 13
    tokens2 = jax.random.normal(k_tok, (batch, seq2, dim), dtype=jnp.float32)
    out2 = jax.block_until_ready(
        exponential_decay(tokens2, w_lambda, w_quantity, w_gate, w_output))
    ref2 = exponential_decay_ref(tokens2, w_lambda, w_quantity, w_gate, w_output)
    assert jnp.allclose(out2, ref2, atol=2e-3, rtol=2e-3), "padded mismatch"

    # bf16 inputs exercise the native-dtype MXU path (f32 accumulation).
    tokens_bf = tokens.astype(jnp.bfloat16)
    out_bf = jax.block_until_ready(
        exponential_decay(tokens_bf, w_lambda, w_quantity, w_gate, w_output))
    ref_bf = exponential_decay_ref(
        tokens_bf.astype(jnp.float32),
        w_lambda.astype(jnp.bfloat16).astype(jnp.float32),
        w_quantity.astype(jnp.bfloat16).astype(jnp.float32),
        w_gate.astype(jnp.bfloat16).astype(jnp.float32),
        w_output.astype(jnp.bfloat16).astype(jnp.float32))
    assert jnp.allclose(out_bf.astype(jnp.float32), ref_bf,
                        atol=1e-1, rtol=1e-1), "bf16 mismatch"

    print("KERNEL_OK")
</pallas_src>

<mosaic_0001>
module attributes {stable_mosaic.version = 11 : i64} {
  func.func @_exp_decay_kernel(%arg0: i32, %arg1: i32, %arg2: i32, %arg3: memref<1x8x32xf32, #tpu.memory_space<vmem>>, %arg4: memref<1x8x32xf32, #tpu.memory_space<vmem>>, %arg5: memref<1x32xf32, #tpu.memory_space<vmem>>, %arg6: memref<32x32xf32, #tpu.memory_space<vmem>>, %arg7: memref<32x32xf32, #tpu.memory_space<vmem>>, %arg8: memref<32x32xf32, #tpu.memory_space<vmem>>, %arg9: memref<1x8x32xf32, #tpu.memory_space<vmem>>, %arg10: memref<8x32xf32, #tpu.memory_space<vmem>>) attributes {dimension_semantics = [#tpu.dimension_semantics<parallel>, #tpu.dimension_semantics<parallel>, #tpu.dimension_semantics<arbitrary>], iteration_bounds = array<i64: 2, 1, 1>, scalar_prefetch = 0 : i64, scratch_operands = 1 : i64, tpu.core_type = #tpu.core_type<tc>, window_params = [{transform_indices = @transform_0, window_bounds = array<i64: 1, 8, 32>}, {transform_indices = @transform_1, window_bounds = array<i64: 1, 8, 32>}, {pipeline_mode = #tpu.pipeline_mode<synchronous>, transform_indices = @transform_2, window_bounds = array<i64: 1, 32>}, {pipeline_mode = #tpu.pipeline_mode<synchronous>, transform_indices = @transform_3, window_bounds = array<i64: 32, 32>}, {pipeline_mode = #tpu.pipeline_mode<synchronous>, transform_indices = @transform_4, window_bounds = array<i64: 32, 32>}, {pipeline_mode = #tpu.pipeline_mode<synchronous>, transform_indices = @transform_5, window_bounds = array<i64: 32, 32>}, {transform_indices = @transform_6, window_bounds = array<i64: 1, 8, 32>}]} {
    %c0_i32 = arith.constant 0 : i32
    %0 = arith.cmpi eq, %arg2, %c0_i32 : i32
    %1 = arith.extui %0 : i1 to i32
    %c0_i32_0 = arith.constant 0 : i32
    %2 = arith.cmpi ne, %1, %c0_i32_0 : i32
    scf.if %2 {
      %cst = arith.constant 0.000000e+00 : f32
      %9 = vector.broadcast %cst : f32 to vector<8x32xf32>
      %c0 = arith.constant 0 : index
      %c0_4 = arith.constant 0 : index
      %10 = vector.load %arg10[%c0, %c0_4] : memref<8x32xf32, #tpu.memory_space<vmem>>, vector<8x32xf32>
      tpu.vector_store %arg10[%c0, %c0_4], %9 {strides = array<i32>} : memref<8x32xf32, #tpu.memory_space<vmem>>, vector<8x32xf32>,
    } else {
    }
    %3 = arith.cmpi sle, %arg2, %arg1 : i32
    %4 = arith.extui %3 : i1 to i32
    %c0_i32_1 = arith.constant 0 : i32
    %5 = arith.cmpi ne, %4, %c0_i32_1 : i32
    scf.if %5 {
      %c0 = arith.constant 0 : index
      %c0_4 = arith.constant 0 : index
      %c0_5 = arith.constant 0 : index
      %9 = vector.load %arg4[%c0, %c0_4, %c0_5] : memref<1x8x32xf32, #tpu.memory_space<vmem>>, vector<1x8x32xf32>
      %10 = vector.shape_cast %9 : vector<1x8x32xf32> to vector<8x32xf32>
      %c0_6 = arith.constant 0 : index
      %c0_7 = arith.constant 0 : index
      %11 = vector.load %arg5[%c0_6, %c0_7] : memref<1x32xf32, #tpu.memory_space<vmem>>, vector<1x32xf32>
      %cst = arith.constant dense<0.000000e+00> : vector<1x8xf32>
      %12 = tpu.matmul %11, %10, %cst {dimension_numbers = #tpu.dot_dimension_numbers<[1], [1], [0], [0], [0, 0, 1, 0], [], []>} : vector<1x32xf32>, vector<8x32xf32>, vector<1x8xf32> -> vector<1x8xf32>
      %cst_8 = arith.constant 0.000000e+00 : f32
      %13 = vector.broadcast %cst_8 : f32 to vector<1x8xf32>
      %14 = arith.minimumf %12, %13 : vector<1x8xf32>
      %15 = math.absf %12 : vector<1x8xf32>
      %cst_9 = arith.constant 0.000000e+00 : f32
      %16 = vector.broadcast %cst_9 : f32 to vector<1x8xf32>
      %17 = arith.subf %16, %15 : vector<1x8xf32>
      %18 = math.exp %17 : vector<1x8xf32>
      %cst_10 = arith.constant 1.000000e+00 : f32
      %19 = vector.broadcast %cst_10 : f32 to vector<1x8xf32>
      %20 = arith.addf %19, %18 : vector<1x8xf32>
      %21 = math.log %20 : vector<1x8xf32>
      %22 = arith.subf %14, %21 : vector<1x8xf32>
      %c8_i32 = arith.constant 8 : i32
      %23 = arith.muli %arg1, %c8_i32 : i32
      %24 = tpu.iota {dimensions = array<i32: 0>} : vector<8x8xi32>
      %25 = vector.broadcast %23 : i32 to vector<8x8xi32>
      %26 = arith.addi %25, %24 : vector<8x8xi32>
      %c8_i32_11 = arith.constant 8 : i32
      %27 = arith.muli %arg2, %c8_i32_11 : i32
      %28 = tpu.iota {dimensions = array<i32: 1>} : vector<8x8xi32>
      %29 = vector.broadcast %27 : i32 to vector<8x8xi32>
      %30 = arith.addi %29, %28 : vector<8x8xi32>
      %31 = arith.subi %26, %30 : vector<8x8xi32>
      %c0_i32_12 = arith.constant 0 : i32
      %32 = vector.broadcast %c0_i32_12 : i32 to vector<8x8xi32>
      %33 = arith.maxsi %31, %32 : vector<8x8xi32>
      %34 = arith.sitofp %33 : vector<8x8xi32> to vector<8x8xf32>
      %c0_i32_13 = arith.constant 0 : i32
      %35 = vector.broadcast %c0_i32_13 : i32 to vector<8x8xi32>
      %36 = arith.cmpi sge, %31, %35 : vector<8x8xi32>
      %37 = vector.broadcast %22 : vector<1x8xf32> to vector<8x8xf32>
      %38 = arith.mulf %37, %34 : vector<8x8xf32>
      %39 = math.exp %38 : vector<8x8xf32>
      %cst_14 = arith.constant 0.000000e+00 : f32
      %40 = vector.broadcast %cst_14 : f32 to vector<8x8xf32>
      %41 = arith.select %36, %39, %40 : vector<8x8xi1>, vector<8x8xf32>
      %c0_15 = arith.constant 0 : index
      %c0_16 = arith.constant 0 : index
      %42 = vector.load %arg6[%c0_15, %c0_16] : memref<32x32xf32, #tpu.memory_space<vmem>>, vector<32x32xf32>
      %cst_17 = arith.constant dense<0.000000e+00> : vector<8x32xf32>
      %43 = tpu.matmul %10, %42, %cst_17 {dimension_numbers = #tpu.dot_dimension_numbers<[1], [0], [0], [1], [0, 0, 1, 1], [], []>} : vector<8x32xf32>, vector<32x32xf32>, vector<8x32xf32> -> vector<8x32xf32>
      %c0_18 = arith.constant 0 : index
      %c0_19 = arith.constant 0 : index
      %44 = vector.load %arg10[%c0_18, %c0_19] : memref<8x32xf32, #tpu.memory_space<vmem>>, vector<8x32xf32>
      %cst_20 = arith.constant dense<0.000000e+00> : vector<8x32xf32>
      %45 = tpu.matmul %41, %43, %cst_20 {dimension_numbers = #tpu.dot_dimension_numbers<[1], [0], [0], [1], [0, 0, 1, 1], [], []>} : vector<8x8xf32>, vector<8x32xf32>, vector<8x32xf32> -> vector<8x32xf32>
      %46 = arith.addf %44, %45 : vector<8x32xf32>
      %c0_21 = arith.constant 0 : index
      %c0_22 = arith.constant 0 : index
      %47 = vector.load %arg10[%c0_21, %c0_22] : memref<8x32xf32, #tpu.memory_space<vmem>>, vector<8x32xf32>
      tpu.vector_store %arg10[%c0_21, %c0_22], %46 {strides = array<i32>} : memref<8x32xf32, #tpu.memory_space<vmem>>, vector<8x32xf32>,
    } else {
    }
    %c0_i32_2 = arith.constant 0 : i32
    %6 = arith.cmpi eq, %arg2, %c0_i32_2 : i32
    %7 = arith.extui %6 : i1 to i32
    %c0_i32_3 = arith.constant 0 : i32
    %8 = arith.cmpi ne, %7, %c0_i32_3 : i32
    scf.if %8 {
      %c0 = arith.constant 0 : index
      %c0_4 = arith.constant 0 : index
      %c0_5 = arith.constant 0 : index
      %9 = vector.load %arg3[%c0, %c0_4, %c0_5] : memref<1x8x32xf32, #tpu.memory_space<vmem>>, vector<1x8x32xf32>
      %10 = vector.shape_cast %9 : vector<1x8x32xf32> to vector<8x32xf32>
      %c0_6 = arith.constant 0 : index
      %c0_7 = arith.constant 0 : index
      %11 = vector.load %arg10[%c0_6, %c0_7] : memref<8x32xf32, #tpu.memory_space<vmem>>, vector<8x32xf32>
      %12 = arith.negf %11 : vector<8x32xf32>
      %13 = math.exp %12 : vector<8x32xf32>
      %cst = arith.constant 1.000000e+00 : f32
      %14 = vector.broadcast %cst : f32 to vector<8x32xf32>
      %15 = arith.addf %14, %13 : vector<8x32xf32>
      %16 = arith.divf %14, %15 : vector<8x32xf32>
      %17 = arith.mulf %11, %16 : vector<8x32xf32>
      %c0_8 = arith.constant 0 : index
      %c0_9 = arith.constant 0 : index
      %18 = vector.load %arg8[%c0_8, %c0_9] : memref<32x32xf32, #tpu.memory_space<vmem>>, vector<32x32xf32>
      %cst_10 = arith.constant dense<0.000000e+00> : vector<8x32xf32>
      %19 = tpu.matmul %17, %18, %cst_10 {dimension_numbers = #tpu.dot_dimension_numbers<[1], [0], [0], [1], [0, 0, 1, 1], [], []>} : vector<8x32xf32>, vector<32x32xf32>, vector<8x32xf32> -> vector<8x32xf32>
      %c0_11 = arith.constant 0 : index
      %c0_12 = arith.constant 0 : index
      %20 = vector.load %arg7[%c0_11, %c0_12] : memref<32x32xf32, #tpu.memory_space<vmem>>, vector<32x32xf32>
      %cst_13 = arith.constant dense<0.000000e+00> : vector<8x32xf32>
      %21 = tpu.matmul %10, %20, %cst_13 {dimension_numbers = #tpu.dot_dimension_numbers<[1], [0], [0], [1], [0, 0, 1, 1], [], []>} : vector<8x32xf32>, vector<32x32xf32>, vector<8x32xf32> -> vector<8x32xf32>
      %22 = arith.mulf %19, %21 : vector<8x32xf32>
      %c0_14 = arith.constant 0 : index
      %c0_15 = arith.constant 0 : index
      %c0_16 = arith.constant 0 : index
      %23 = vector.load %arg9[%c0_14, %c0_15, %c0_16] : memref<1x8x32xf32, #tpu.memory_space<vmem>>, vector<1x8x32xf32>
      %24 = vector.shape_cast %23 : vector<1x8x32xf32> to vector<8x32xf32>
      %25 = vector.shape_cast %22 : vector<8x32xf32> to vector<1x8x32xf32>
      tpu.vector_store %arg9[%c0_14, %c0_15, %c0_16], %25 {strides = array<i32>} : memref<1x8x32xf32, #tpu.memory_space<vmem>>, vector<1x8x32xf32>,
    } else {
    }
    return
  }
  func.func @transform_0(%arg0: i32, %arg1: i32, %arg2: i32) -> (i32, i32, i32) {
    %c0_i32 = arith.constant 0 : i32
    %c0_i32_0 = arith.constant 0 : i32
    return %arg0, %arg1, %c0_i32 : i32, i32, i32
  }
  func.func @transform_1(%arg0: i32, %arg1: i32, %arg2: i32) -> (i32, i32, i32) {
    %c0_i32 = arith.constant 0 : i32
    %c0_i32_0 = arith.constant 0 : i32
    return %arg0, %arg2, %c0_i32 : i32, i32, i32
  }
  func.func @transform_2(%arg0: i32, %arg1: i32, %arg2: i32) -> (i32, i32) {
    %c0_i32 = arith.constant 0 : i32
    %c0_i32_0 = arith.constant 0 : i32
    %c0_i32_1 = arith.constant 0 : i32
    return %c0_i32, %c0_i32_0 : i32, i32
  }
  func.func @transform_3(%arg0: i32, %arg1: i32, %arg2: i32) -> (i32, i32) {
    %c0_i32 = arith.constant 0 : i32
    %c0_i32_0 = arith.constant 0 : i32
    %c0_i32_1 = arith.constant 0 : i32
    return %c0_i32, %c0_i32_0 : i32, i32
  }
  func.func @transform_4(%arg0: i32, %arg1: i32, %arg2: i32) -> (i32, i32) {
    %c0_i32 = arith.constant 0 : i32
    %c0_i32_0 = arith.constant 0 : i32
    %c0_i32_1 = arith.constant 0 : i32
    return %c0_i32, %c0_i32_0 : i32, i32
  }
  func.func @transform_5(%arg0: i32, %arg1: i32, %arg2: i32) -> (i32, i32) {
    %c0_i32 = arith.constant 0 : i32
    %c0_i32_0 = arith.constant 0 : i32
    %c0_i32_1 = arith.constant 0 : i32
    return %c0_i32, %c0_i32_0 : i32, i32
  }
  func.func @transform_6(%arg0: i32, %arg1: i32, %arg2: i32) -> (i32, i32, i32) {
    %c0_i32 = arith.constant 0 : i32
    %c0_i32_0 = arith.constant 0 : i32
    return %arg0, %arg1, %c0_i32 : i32, i32, i32
  }
}

</mosaic_0001>

<llo_original>
// kernel: tpu_custom_call.1
$region0: #{tpu_custom_call.1}
  #allocation0 [shape = 'u32[]', space=smem, size = 0x4, offset = 0x4, fixed_abs, tag = 'smem constant byte address 0x4 - core index']
  #allocation1 [shape = 'u32[144,128]{1,0:T(1,128)}', space=vmem, size = 0x12000, scoped, tag = 'internal scratch']
  #allocation2 [shape = 'f32[8,32]{1,0:T(8,128)}', space=vmem, size = 0x1000, scoped, tag = 'scratch operand']
  %s0 = inlined_call_operand.hbm [shape: f32[2,8,32], index: 0, kind: input, shape index: {}]
  %s1 = inlined_call_operand.hbm [shape: f32[2,8,32], index: 1, kind: input, shape index: {}]
  %s2 = inlined_call_operand.vmem [shape: f32[1,32], index: 2, kind: input, shape index: {}]
  %s3 = inlined_call_operand.hbm [shape: f32[32,32], index: 3, kind: input, shape index: {}]
  %s4 = inlined_call_operand.hbm [shape: f32[32,32], index: 4, kind: input, shape index: {}]
  %s5 = inlined_call_operand.hbm [shape: f32[32,32], index: 5, kind: input, shape index: {}]
  %s6 = inlined_call_operand.hbm [shape: f32[2,8,32], index: 6, kind: output, shape index: {}]
  %s7 = sld [smem:[#allocation0]]
  $region89: #{tpu_custom_call.1} parent=0
    _
  %s9 = ssub.s32 1, %s7
  %s10 = scalar_select 0, %s9, %s7
  $region1: #{tpu_custom_call.1} parent=0
    #allocation3 [shape = 'u8[8192]{0}', space=vmem, size = 0x2000, scoped, tag = 'input window, operand 0']
    #allocation4 [shape = 's32[2]{0}', space=sflag, size = 0x8, scoped, tag = 'scoped memory for tpu_custom_call.1']
    #allocation5 [shape = 's32[2]{0}', space=sflag, size = 0x8, scoped, tag = 'scoped memory for tpu_custom_call.1']
    #allocation6 [shape = 'u8[8192]{0}', space=vmem, size = 0x2000, scoped, tag = 'input window, operand 1']
    #allocation7 [shape = 's32[2]{0}', space=sflag, size = 0x8, scoped, tag = 'scoped memory for tpu_custom_call.1']
    #allocation8 [shape = 'u8[16384]{0}', space=vmem, size = 0x4000, scoped, tag = 'input window, operand 3, single buffered']
    #allocation9 [shape = 'u8[16384]{0}', space=vmem, size = 0x4000, scoped, tag = 'input window, operand 4, single buffered']
    #allocation10 [shape = 's32[1]{0}', space=sflag, size = 0x4, scoped, tag = 'scoped memory for tpu_custom_call.1']
    #allocation11 [shape = 'u8[16384]{0}', space=vmem, size = 0x4000, scoped, tag = 'input window, operand 5, single buffered']
    #allocation12 [shape = 'u8[8192]{0}', space=vmem, size = 0x2000, scoped, tag = 'output window, operand 0']
    %11 = vsyncpa [#allocation4], 0
    %s12 = scalar_lea.sflag [#allocation4], 1
    %13 = vsyncpa %s12, 0
    %14 = vsyncpa [#allocation7], 0
    %s15 = scalar_lea.sflag [#allocation7], 1
    %16 = vsyncpa %s15, 0
    %17 = vsyncpa [#allocation10], 0
    %18 = vsyncpa [#allocation5], 0
    %s19 = scalar_lea.sflag [#allocation5], 1
    %20 = vsyncpa %s19, 0
    loop: start=0, step=1, limit=4
    $region2: #{tpu_custom_call.1} parent=1 // loop_pre_header
      _
    $region3: #{tpu_custom_call.1} parent=1 // loop_header
      %s22 = sphi 0, %s26
      %p23 = scmp.ge.s32.totalorder %s22, 4
      %s29 = sphi 0, %s48
      %s30 = sphi 0, %s44
      %s31 = sphi 0, %s40
      %s32 = sphi 0, %s29
      %s33 = sphi 0, %s30
      %s34 = sphi 0, %s31
      %s35 = sphi 0, %s32
      %s36 = sphi 0, %s33
      %s37 = sphi 0, %s34
      %s53 = sphi 0, %s55
      %s56 = sphi 0, %s53
      %s57 = sphi 0, %s56
      %s73 = sphi 0, %s57
      %s81 = sphi 0, %s83
      %s84 = sphi 0, %s81
      %s85 = sphi 0, %s84
      %s101 = sphi 0, %s85
      %s105 = sphi 0, %s105
      %s107 = sphi 0, %s105
      %s108 = sphi 0, %s107
      %s122 = sphi 0, %s108
      %s126 = sphi 0, %s126
      %s128 = sphi 0, %s126
      %s129 = sphi 0, %s128
      %s143 = sphi 0, %s129
      %s147 = sphi 0, %s147
      %s149 = sphi 0, %s147
      %s150 = sphi 0, %s149
      %s164 = sphi 0, %s150
      %s168 = sphi 0, %s168
      %s170 = sphi 0, %s168
      %s171 = sphi 0, %s170
      %s185 = sphi 0, %s171
      %s193 = sphi 0, %s195
      %s196 = sphi 0, %s193
      %s197 = sphi 0, %s196
      %s213 = sphi 0, %s197
    $region4: #{tpu_custom_call.1} parent=1 // loop_header_branch
      %25 = sbr.rel (%p23) target = $region8
    $region5: #{tpu_custom_call.1} parent=1 // loop_body
      %s27 = ssub.s32 %s22, 1
      %s28 = ssub.s32 %s22, 2
      %s38 = sadd.s32 1, %s31
      %p39 = scmp.ge.s32.totalorder %s38, 1
      %s40 = scalar_select %p39, 0, %s38
      %s41 = sadd.s32 1, %s30
      %s42 = scalar_select %p39, %s41, %s30
      %p43 = scmp.ge.s32.totalorder %s42, 1
      %s44 = scalar_select %p43, 0, %s42
      %s45 = sadd.s32 1, %s29
      %s46 = scalar_select %p43, %s45, %s29
      %p47 = scmp.ge.s32.totalorder %s46, 2
      %s48 = scalar_select %p47, 0, %s46
      %s49 = ssub.s32 %s29, %s48
      %s50 = ssub.s32 %s30, %s44
      %s51 = sor.u32 %s49, %s50
      %p52 = scmp.eq.s32.totalorder %s51, 0
      %s54 = sadd.s32 %s53, 1
      %s55 = scalar_select %p52, %s53, %s54
      %p58 = pneg %p52
      %p59 = scmp.eq.s32.totalorder %s22, 1
      %p60 = por %p58, %p59
      %p61 = scmp.ne.s32.totalorder %s53, %s56
      %p62 = scmp.eq.s32.totalorder %s22, 0
      %p63 = por %p61, %p62
      %p64 = scmp.ne.s32.totalorder %s53, %s56
      %p65 = scmp.eq.s32.totalorder %s27, 1
      %p66 = por %p64, %p65
      %p67 = scmp.ne.s32.totalorder %s56, %s57
      %p68 = scmp.eq.s32.totalorder %s27, 0
      %p69 = por %p67, %p68
      %p70 = scmp.ne.s32.totalorder %s56, %s57
      %p71 = scmp.eq.s32.totalorder %s28, 1
      %p72 = por %p70, %p71
      %p74 = scmp.ne.s32.totalorder %s57, %s73
      %p75 = scmp.eq.s32.totalorder %s28, 0
      %p76 = por %p74, %p75
      %s77 = ssub.s32 %s29, %s48
      %s78 = ssub.s32 %s31, %s40
      %s79 = sor.u32 %s77, %s78
      %p80 = scmp.eq.s32.totalorder %s79, 0
      %s82 = sadd.s32 %s81, 1
      %s83 = scalar_select %p80, %s81, %s82
      %p86 = pneg %p80
      %p87 = scmp.eq.s32.totalorder %s22, 1
      %p88 = por %p86, %p87
      %p89 = scmp.ne.s32.totalorder %s81, %s84
      %p90 = scmp.eq.s32.totalorder %s22, 0
      %p91 = por %p89, %p90
      %p92 = scmp.ne.s32.totalorder %s81, %s84
      %p93 = scmp.eq.s32.totalorder %s27, 1
      %p94 = por %p92, %p93
      %p95 = scmp.ne.s32.totalorder %s84, %s85
      %p96 = scmp.eq.s32.totalorder %s27, 0
      %p97 = por %p95, %p96
      %p98 = scmp.ne.s32.totalorder %s84, %s85
      %p99 = scmp.eq.s32.totalorder %s28, 1
      %p100 = por %p98, %p99
      %p102 = scmp.ne.s32.totalorder %s85, %s101
      %p103 = scmp.eq.s32.totalorder %s28, 0
      %p104 = por %p102, %p103
      %s106 = sadd.s32 %s105, 1
      %p109 = scmp.eq.s32.totalorder %s22, 1
      %p110 = scmp.ne.s32.totalorder %s105, %s107
      %p111 = scmp.eq.s32.totalorder %s22, 0
      %p112 = por %p110, %p111
      %p113 = scmp.ne.s32.totalorder %s105, %s107
      %p114 = scmp.eq.s32.totalorder %s27, 1
      %p115 = por %p113, %p114
      %p116 = scmp.ne.s32.totalorder %s107, %s108
      %p117 = scmp.eq.s32.totalorder %s27, 0
      %p118 = por %p116, %p117
      %p119 = scmp.ne.s32.totalorder %s107, %s108
      %p120 = scmp.eq.s32.totalorder %s28, 1
      %p121 = por %p119, %p120
      %p123 = scmp.ne.s32.totalorder %s108, %s122
      %p124 = scmp.eq.s32.totalorder %s28, 0
      %p125 = por %p123, %p124
      %s127 = sadd.s32 %s126, 1
      %p130 = scmp.eq.s32.totalorder %s22, 1
      %p131 = scmp.ne.s32.totalorder %s126, %s128
      %p132 = scmp.eq.s32.totalorder %s22, 0
      %p133 = por %p131, %p132
      %p134 = scmp.ne.s32.totalorder %s126, %s128
      %p135 = scmp.eq.s32.totalorder %s27, 1
      %p136 = por %p134, %p135
      %p137 = scmp.ne.s32.totalorder %s128, %s129
      %p138 = scmp.eq.s32.totalorder %s27, 0
      %p139 = por %p137, %p138
      %p140 = scmp.ne.s32.totalorder %s128, %s129
      %p141 = scmp.eq.s32.totalorder %s28, 1
      %p142 = por %p140, %p141
      %p144 = scmp.ne.s32.totalorder %s129, %s143
      %p145 = scmp.eq.s32.totalorder %s28, 0
      %p146 = por %p144, %p145
      %s148 = sadd.s32 %s147, 1
      %p151 = scmp.eq.s32.totalorder %s22, 1
      %p152 = scmp.ne.s32.totalorder %s147, %s149
      %p153 = scmp.eq.s32.totalorder %s22, 0
      %p154 = por %p152, %p153
      %p155 = scmp.ne.s32.totalorder %s147, %s149
      %p156 = scmp.eq.s32.totalorder %s27, 1
      %p157 = por %p155, %p156
      %p158 = scmp.ne.s32.totalorder %s149, %s150
      %p159 = scmp.eq.s32.totalorder %s27, 0
      %p160 = por %p158, %p159
      %p161 = scmp.ne.s32.totalorder %s149, %s150
      %p162 = scmp.eq.s32.totalorder %s28, 1
      %p163 = por %p161, %p162
      %p165 = scmp.ne.s32.totalorder %s150, %s164
      %p166 = scmp.eq.s32.totalorder %s28, 0
      %p167 = por %p165, %p166
      %s169 = sadd.s32 %s168, 1
      %p172 = scmp.eq.s32.totalorder %s22, 1
      %p173 = scmp.ne.s32.totalorder %s168, %s170
      %p174 = scmp.eq.s32.totalorder %s22, 0
      %p175 = por %p173, %p174
      %p176 = scmp.ne.s32.totalorder %s168, %s170
      %p177 = scmp.eq.s32.totalorder %s27, 1
      %p178 = por %p176, %p177
      %p179 = scmp.ne.s32.totalorder %s170, %s171
      %p180 = scmp.eq.s32.totalorder %s27, 0
      %p181 = por %p179, %p180
      %p182 = scmp.ne.s32.totalorder %s170, %s171
      %p183 = scmp.eq.s32.totalorder %s28, 1
      %p184 = por %p182, %p183
      %p186 = scmp.ne.s32.totalorder %s171, %s185
      %p187 = scmp.eq.s32.totalorder %s28, 0
      %p188 = por %p186, %p187
      %s189 = ssub.s32 %s29, %s48
      %s190 = ssub.s32 %s30, %s44
      %s191 = sor.u32 %s189, %s190
      %p192 = scmp.eq.s32.totalorder %s191, 0
      %s194 = sadd.s32 %s193, 1
      %s195 = scalar_select %p192, %s193, %s194
      %p198 = pneg %p192
      %p199 = scmp.eq.s32.totalorder %s22, 1
      %p200 = por %p198, %p199
      %p201 = scmp.ne.s32.totalorder %s193, %s196
      %p202 = scmp.eq.s32.totalorder %s22, 0
      %p203 = por %p201, %p202
      %p204 = scmp.ne.s32.totalorder %s193, %s196
      %p205 = scmp.eq.s32.totalorder %s27, 1
      %p206 = por %p204, %p205
      %p207 = scmp.ne.s32.totalorder %s196, %s197
      %p208 = scmp.eq.s32.totalorder %s27, 0
      %p209 = por %p207, %p208
      %p210 = scmp.ne.s32.totalorder %s196, %s197
      %p211 = scmp.eq.s32.totalorder %s28, 1
      %p212 = por %p210, %p211
      %p214 = scmp.ne.s32.totalorder %s197, %s213
      %p215 = scmp.eq.s32.totalorder %s28, 0
      %p216 = por %p214, %p215
      %p217 = scmp.le.s32.totalorder 1, %s22
      %p218 = scmp.lt.s32.totalorder %s22, 3
      %p219 = pnand %p217, %p218
      %p220 = pneg %p219
      // Predicated region
      $region9: #{tpu_custom_call.1} parent=5 // pred_check
        _
      $region10: #{tpu_custom_call.1} parent=5 // pred_check_branch
        %222 = sbr.rel (%p219) target = $region12
      $region11: #{tpu_custom_call.1} parent=5 // pred_region
        %s223 = ssub.s32 %s22, 1
        // Predicated region
        $region13: #{tpu_custom_call.1} parent=11 // pred_check
          %p224 = pneg %p118
        $region14: #{tpu_custom_call.1} parent=11 // pred_check_branch
          %226 = sbr.rel (%p224) target = $region16
        $region15: #{tpu_custom_call.1} parent=11 // pred_region
          _
        $region16: #{tpu_custom_call.1} parent=11 // pred_fallthru
          _
        // Predicated region
        $region17: #{tpu_custom_call.1} parent=11 // pred_check
          %p227 = pneg %p139
        $region18: #{tpu_custom_call.1} parent=11 // pred_check_branch
          %229 = sbr.rel (%p227) target = $region20
        $region19: #{tpu_custom_call.1} parent=11 // pred_region
          %s231 = ssub.s32 512, 512
          %232 = vsyncadd [#allocation7], %s231
          %s233 = sshll.u32 [#allocation8], 4
          %s234 = int_to_ptr.vmem [resolvable:$true] %s233
          %239 = dma.hbm_to_vmem [thread:$0]  %s3, 512, %s234, [#allocation7], 128, 128, 8
        $region20: #{tpu_custom_call.1} parent=11 // pred_fallthru
          _
        // Predicated region
        $region21: #{tpu_custom_call.1} parent=11 // pred_check
          %p240 = pneg %p160
        $region22: #{tpu_custom_call.1} parent=11 // pred_check_branch
          %242 = sbr.rel (%p240) target = $region24
        $region23: #{tpu_custom_call.1} parent=11 // pred_region
          %s244 = ssub.s32 512, 512
          %245 = vsyncadd [#allocation10], %s244
          %s246 = sshll.u32 [#allocation9], 4
          %s247 = int_to_ptr.vmem [resolvable:$true] %s246
          %252 = dma.hbm_to_vmem [thread:$0]  %s4, 512, %s247, [#allocation10], 128, 128, 8
        $region24: #{tpu_custom_call.1} parent=11 // pred_fallthru
          _
        // Predicated region
        $region25: #{tpu_custom_call.1} parent=11 // pred_check
          %p253 = pneg %p181
        $region26: #{tpu_custom_call.1} parent=11 // pred_check_branch
          %255 = sbr.rel (%p253) target = $region28
        $region27: #{tpu_custom_call.1} parent=11 // pred_region
          %s257 = ssub.s32 512, 512
          %258 = vsyncadd [#allocation10], %s257
          %s259 = sshll.u32 [#allocation11], 4
          %s260 = int_to_ptr.vmem [resolvable:$true] %s259
          %265 = dma.hbm_to_vmem [thread:$0]  %s5, 512, %s260, [#allocation10], 128, 128, 8
        $region28: #{tpu_custom_call.1} parent=11 // pred_fallthru
          _
      $region12: #{tpu_custom_call.1} parent=5 // pred_fallthru
        _
      %p266 = scmp.lt.s32.totalorder %s22, 2
      // Predicated region
      $region29: #{tpu_custom_call.1} parent=5 // pred_check
        %p267 = pneg %p266
      $region30: #{tpu_custom_call.1} parent=5 // pred_check_branch
        %269 = sbr.rel (%p267) target = $region32
      $region31: #{tpu_custom_call.1} parent=5 // pred_region
        // Predicated region
        $region33: #{tpu_custom_call.1} parent=31 // pred_check
          %p270 = pneg %p63
        $region34: #{tpu_custom_call.1} parent=31 // pred_check_branch
          %272 = sbr.rel (%p270) target = $region36
        $region35: #{tpu_custom_call.1} parent=31 // pred_region
          %s273 = sand.u32 %s53, 1
          %s274 = scalar_lea.sflag [#allocation4], %s273
          %s275 = sand.u32 %s53, 1
          %s276 = smul.addr %s275, 8
          %s277 = scalar_lea.vmem [#allocation3], %s276
          %s279 = ssub.s32 128, 128
          %280 = vsyncadd %s274, %s279
          %s281 = sadd.s32 %s30, %s29
          %s282 = smul.addr %s281, 128
          %s283 = scalar_lea.hbm %s0, %s282
          %s285 = sshll.u32 %s277, 4
          %s286 = int_to_ptr.vmem [resolvable:$true] %s285
          %288 = dma.hbm_to_vmem [thread:$0]  %s283, 128, %s286, %s274
        $region36: #{tpu_custom_call.1} parent=31 // pred_fallthru
          _
        // Predicated region
        $region37: #{tpu_custom_call.1} parent=31 // pred_check
          %p289 = pneg %p91
        $region38: #{tpu_custom_call.1} parent=31 // pred_check_branch
          %291 = sbr.rel (%p289) target = $region40
        $region39: #{tpu_custom_call.1} parent=31 // pred_region
          %s292 = sand.u32 %s22, 1
          %s293 = scalar_lea.sflag [#allocation7], %s292
          %s294 = sand.u32 %s81, 1
          %s295 = smul.addr %s294, 8
          %s296 = scalar_lea.vmem [#allocation6], %s295
          %s298 = ssub.s32 128, 128
          %299 = vsyncadd %s293, %s298
          %s300 = sadd.s32 %s31, %s29
          %s301 = smul.addr %s300, 128
          %s302 = scalar_lea.hbm %s1, %s301
          %s304 = sshll.u32 %s296, 4
          %s305 = int_to_ptr.vmem [resolvable:$true] %s304
          %307 = dma.hbm_to_vmem [thread:$0]  %s302, 128, %s305, %s293
        $region40: #{tpu_custom_call.1} parent=31 // pred_fallthru
          _
      $region32: #{tpu_custom_call.1} parent=5 // pred_fallthru
        _
      %p308 = scmp.le.s32.totalorder 1, %s22
      %p309 = scmp.lt.s32.totalorder %s22, 3
      %p310 = pnand %p308, %p309
      %p311 = pneg %p310
      // Predicated region
      $region41: #{tpu_custom_call.1} parent=5 // pred_check
        _
      $region42: #{tpu_custom_call.1} parent=5 // pred_check_branch
        %313 = sbr.rel (%p310) target = $region44
      $region43: #{tpu_custom_call.1} parent=5 // pred_region
        %s314 = ssub.s32 %s22, 1
        %s315 = sand.u32 %s56, 1
        %s316 = scalar_lea.sflag [#allocation4], %s315
        %s317 = sand.u32 %s56, 1
        %s318 = smul.addr %s317, 8
        %s319 = scalar_lea.vmem [#allocation3], %s318
        // Predicated region
        $region45: #{tpu_custom_call.1} parent=43 // pred_check
          %p320 = pneg %p69
        $region46: #{tpu_custom_call.1} parent=43 // pred_check_branch
          %322 = sbr.rel (%p320) target = $region48
        $region47: #{tpu_custom_call.1} parent=43 // pred_region
          %323 = dma.done %s316, 128
        $region48: #{tpu_custom_call.1} parent=43 // pred_fallthru
          _
        %s324 = sand.u32 %s27, 1
        %s325 = scalar_lea.sflag [#allocation7], %s324
        %s326 = sand.u32 %s84, 1
        %s327 = smul.addr %s326, 8
        %s328 = scalar_lea.vmem [#allocation6], %s327
        // Predicated region
        $region49: #{tpu_custom_call.1} parent=43 // pred_check
          %p329 = pneg %p97
        $region50: #{tpu_custom_call.1} parent=43 // pred_check_branch
          %331 = sbr.rel (%p329) target = $region52
        $region51: #{tpu_custom_call.1} parent=43 // pred_region
          %332 = dma.done %s325, 128
        $region52: #{tpu_custom_call.1} parent=43 // pred_fallthru
          _
        // Predicated region
        $region53: #{tpu_custom_call.1} parent=43 // pred_check
          %p333 = pneg %p139
        $region54: #{tpu_custom_call.1} parent=43 // pred_check_branch
          %335 = sbr.rel (%p333) target = $region56
        $region55: #{tpu_custom_call.1} parent=43 // pred_region
          %336 = dma.done [#allocation7], 512
        $region56: #{tpu_custom_call.1} parent=43 // pred_fallthru
          _
        // Predicated region
        $region57: #{tpu_custom_call.1} parent=43 // pred_check
          %p337 = pneg %p160
        $region58: #{tpu_custom_call.1} parent=43 // pred_check_branch
          %339 = sbr.rel (%p337) target = $region60
        $region59: #{tpu_custom_call.1} parent=43 // pred_region
          %340 = dma.done [#allocation10], 512
        $region60: #{tpu_custom_call.1} parent=43 // pred_fallthru
          _
        // Predicated region
        $region61: #{tpu_custom_call.1} parent=43 // pred_check
          %p341 = pneg %p181
        $region62: #{tpu_custom_call.1} parent=43 // pred_check_branch
          %343 = sbr.rel (%p341) target = $region64
        $region63: #{tpu_custom_call.1} parent=43 // pred_region
          %344 = dma.done [#allocation10], 512
        $region64: #{tpu_custom_call.1} parent=43 // pred_fallthru
          _
        %s345 = sand.u32 %s56, 1
        %s346 = scalar_lea.sflag [#allocation4], %s345
        %s347 = sand.u32 %s56, 1
        %s348 = smul.addr %s347, 8
        %s349 = scalar_lea.vmem [#allocation3], %s348
        %p350 = pneg %p69
        %p351 = pneg %p66
        %s352 = sand.u32 %s27, 1
        %s353 = scalar_lea.sflag [#allocation7], %s352
        %s354 = sand.u32 %s84, 1
        %s355 = smul.addr %s354, 8
        %s356 = scalar_lea.vmem [#allocation6], %s355
        %p357 = pneg %p97
        %p358 = pneg %p94
        %p359 = pneg %p118
        %p360 = pneg %p115
        %p361 = pneg %p139
        %p362 = pneg %p136
        %p363 = pneg %p160
        %p364 = pneg %p157
        %p365 = pneg %p181
        %p366 = pneg %p178
        %p367 = pneg %p209
        %p368 = pneg %p206
        %s369 = sand.u32 %s196, 1
        %s370 = scalar_lea.sflag [#allocation5], %s369
        %s371 = sand.u32 %s196, 1
        %s372 = smul.addr %s371, 8
        %s373 = scalar_lea.vmem [#allocation12], %s372
        %p374 = scmp.eq.s32.totalorder %s34, 0
        // Predicated region
        $region65: #{tpu_custom_call.1} parent=43 // pred_check
          %p375 = pneg %p374
        $region66: #{tpu_custom_call.1} parent=43 // pred_check_branch
          %377 = sbr.rel (%p375) target = $region68
        $region67: #{tpu_custom_call.1} parent=43 // pred_region
          %vm378 = vcmask 261120
          %379 = vst.msk [vmem:[#allocation2] sm:$0xff] %vm378, 0.0
        $region68: #{tpu_custom_call.1} parent=43 // pred_fallthru
          _
        %p380 = scmp.le.s32.totalorder %s34, %s33
        // Predicated region
        $region69: #{tpu_custom_call.1} parent=43 // pred_check
          %p381 = pneg %p380
        $region70: #{tpu_custom_call.1} parent=43 // pred_check_branch
          %383 = sbr.rel (%p381) target = $region72
        $region71: #{tpu_custom_call.1} parent=43 // pred_region
          %v384 = vld [vmem:[%s328] sm:$0xff]
          %v385 = vld [vmem:[%s2] sm:$0x1]
          %vm386 = vcmask 261120
          %v388 = vsel %vm386, %v385, 0
          %v391 = vsel %vm386, %v384, 0
          %393 = vmatprep.subr.mxu0 0.0
          %394 = vmatpush1.xpose.msra.mxu0 %v391
          %395 = vmatprep.subr.mxu0 0.0
          %396 = vmatpush1.xpose.msra.mxu0 0.0
          %397 = vmatprep.subr.mxu0 0.0
          %398 = vmatpush1.xpose.msra.mxu0 0.0
          %399 = vmatprep.subr.mxu0 0.0
          %400 = vmatpush1.xpose.msra.mxu0 0.0
          %401 = vmatprep.subr.mxu0 0.0
          %402 = vmatpush1.xpose.msra.mxu0 0.0
          %403 = vmatprep.subr.mxu0 0.0
          %404 = vmatpush1.xpose.msra.mxu0 0.0
          %405 = vmatprep.subr.mxu0 0.0
          %406 = vmatpush1.xpose.msra.mxu0 0.0
          %407 = vmatprep.subr.mxu0 0.0
          %408 = vmatpush1.xpose.msra.mxu0 0.0
          %409 = vmatprep.subr.mxu0 0.0
          %410 = vmatpush1.xpose.msra.mxu0 0.0
          %411 = vmatprep.subr.mxu0 0.0
          %412 = vmatpush1.xpose.msra.mxu0 0.0
          %413 = vmatprep.subr.mxu0 0.0
          %414 = vmatpush1.xpose.msra.mxu0 0.0
          %415 = vmatprep.subr.mxu0 0.0
          %416 = vmatpush1.xpose.msra.mxu0 0.0
          %417 = vmatprep.subr.mxu0 0.0
          %418 = vmatpush1.xpose.msra.mxu0 0.0
          %419 = vmatprep.subr.mxu0 0.0
          %420 = vmatpush1.xpose.msra.mxu0 0.0
          %421 = vmatprep.subr.mxu0 0.0
          %422 = vmatpush1.xpose.msra.mxu0 0.0
          %423 = vmatprep.subr.mxu0 0.0
          %424 = vmatpush1.xpose.msra.mxu0 0.0
          %425 = vmatprep.subr.mxu0 0.0
          %426 = vmatpush1.xpose.msra.mxu0 0.0
          %427 = vmatprep.subr.mxu0 0.0
          %428 = vmatpush1.xpose.msra.mxu0 0.0
          %429 = vmatprep.subr.mxu0 0.0
          %430 = vmatpush1.xpose.msra.mxu0 0.0
          %431 = vmatprep.subr.mxu0 0.0
          %432 = vmatpush1.xpose.msra.mxu0 0.0
          %433 = vmatprep.subr.mxu0 0.0
          %434 = vmatpush1.xpose.msra.mxu0 0.0
          %435 = vmatprep.subr.mxu0 0.0
          %436 = vmatpush1.xpose.msra.mxu0 0.0
          %437 = vmatprep.subr.mxu0 0.0
          %438 = vmatpush1.xpose.msra.mxu0 0.0
          %439 = vmatprep.subr.mxu0 0.0
          %440 = vmatpush1.xpose.msra.mxu0 0.0
          %441 = vmatprep.subr.mxu0 0.0
          %442 = vmatpush1.xpose.msra.mxu0 0.0
          %443 = vmatprep.subr.mxu0 0.0
          %444 = vmatpush1.xpose.msra.mxu0 0.0
          %445 = vmatprep.subr.mxu0 0.0
          %446 = vmatpush1.xpose.msra.mxu0 0.0
          %447 = vmatprep.subr.mxu0 0.0
          %448 = vmatpush1.xpose.msra.mxu0 0.0
          %449 = vmatprep.subr.mxu0 0.0
          %450 = vmatpush1.xpose.msra.mxu0 0.0
          %451 = vmatprep.subr.mxu0 0.0
          %452 = vmatpush1.xpose.msra.mxu0 0.0
          %453 = vmatprep.subr.mxu0 0.0
          %454 = vmatpush1.xpose.msra.mxu0 0.0
          %455 = vmatprep.subr.mxu0 0.0
          %456 = vmatpush1.xpose.msra.mxu0 0.0
          %457 = vmatprep.mubr.f32.mxu0 0.0
          %458 = vmatmul.mubr.f32.gmra.mrb[0].mxu0 %v388
          %v459 = vpop.f32.mrb[0].mxu0
          %v460 = vadd.f32 0.0, %v459
          %v461 = vpop.f32.mrb[0].mxu0
          %462 = vdwg.mxu0
          %v463 = vmin.f32 %v460, 0.0
          %v464 = vand.u32 2147483647, %v460
          %v465 = vsub.f32 0.0, %v464
          %v466 = vmul.f32 %v465, 1.442695
          %v467 = vpow.pop %v466
          %v468 = vadd.f32 %v467, 1.0
          %v469 = vlog2.pop %v468
          %v470 = vmul.f32 %v469, 0.6931472
          %v471 = vsub.f32 %v463, %v470
          %s472 = smul.u32 %s33, 8
          %v473 = vlaneseq
          %v474 = vshrl.u32 %v473, 7
          %v475 = vstv %s472
          %v476 = vadd.s32 %v475, %v474
          %s477 = smul.u32 %s34, 8
          %v478 = vlaneseq
          %v479 = vand.u32 %v478, 127
          %v480 = vstv %s477
          %v481 = vadd.s32 %v480, %v479
          %v482 = vsub.s32 %v476, %v481
          %vm483 = vcmp.gt.s32.totalorder %v482, 0
          %v484 = vsel %vm483, %v482, 0
          %v485 = vcvt.s32.f32 %v484
          %vm486 = vcmp.ge.s32.totalorder %v482, 0
          %v487 = vlaneseq
          %v488 = vshrl.u32 %v487, 7
          %v489 = vsub.s32 0, %v488
          %v490 = vrot.slane %v471, %v489
          %v491 = vmul.f32 %v490, %v485
          %v492 = vmul.f32 %v491, 1.442695
          %v493 = vpow.pop %v492
          %v494 = vsel %vm486, %v493, 0.0
          %v495 = vld [vmem:[#allocation8] sm:$0xff]
          %v496 = vld [vmem:[#allocation8 + $0x8] sm:$0xff]
          %v497 = vld [vmem:[#allocation8 + $0x10] sm:$0xff]
          %v498 = vld [vmem:[#allocation8 + $0x18] sm:$0xff]
          %499 = vmatprep.subr.mxu0 0.0
          %500 = vmatpush1.msra.mxu0 %v495
          %501 = vmatprep.subr.mxu0 0.0
          %502 = vmatpush1.msra.mxu0 %v496
          %503 = vmatprep.subr.mxu0 0.0
          %504 = vmatpush1.msra.mxu0 %v497
          %505 = vmatprep.subr.mxu0 0.0
          %506 = vmatpush1.msra.mxu0 %v498
          %507 = vmatprep.subr.mxu0 0.0
          %508 = vmatpush1.msra.mxu0 0.0
          %509 = vmatprep.subr.mxu0 0.0
          %510 = vmatpush1.msra.mxu0 0.0
          %511 = vmatprep.subr.mxu0 0.0
          %512 = vmatpush1.msra.mxu0 0.0
          %513 = vmatprep.subr.mxu0 0.0
          %514 = vmatpush1.msra.mxu0 0.0
          %515 = vmatprep.subr.mxu0 0.0
          %516 = vmatpush1.msra.mxu0 0.0
          %517 = vmatprep.subr.mxu0 0.0
          %518 = vmatpush1.msra.mxu0 0.0
          %519 = vmatprep.subr.mxu0 0.0
          %520 = vmatpush1.msra.mxu0 0.0
          %521 = vmatprep.subr.mxu0 0.0
          %522 = vmatpush1.msra.mxu0 0.0
          %523 = vmatprep.subr.mxu0 0.0
          %524 = vmatpush1.msra.mxu0 0.0
          %525 = vmatprep.subr.mxu0 0.0
          %526 = vmatpush1.msra.mxu0 0.0
          %527 = vmatprep.subr.mxu0 0.0
          %528 = vmatpush1.msra.mxu0 0.0
          %529 = vmatprep.subr.mxu0 0.0
          %530 = vmatpush1.msra.mxu0 0.0
          %531 = vmatprep.subr.mxu0 0.0
          %532 = vmatpush1.msra.mxu0 0.0
          %533 = vmatprep.subr.mxu0 0.0
          %534 = vmatpush1.msra.mxu0 0.0
          %535 = vmatprep.subr.mxu0 0.0
          %536 = vmatpush1.msra.mxu0 0.0
          %537 = vmatprep.subr.mxu0 0.0
          %538 = vmatpush1.msra.mxu0 0.0
          %539 = vmatprep.subr.mxu0 0.0
          %540 = vmatpush1.msra.mxu0 0.0
          %541 = vmatprep.subr.mxu0 0.0
          %542 = vmatpush1.msra.mxu0 0.0
          %543 = vmatprep.subr.mxu0 0.0
          %544 = vmatpush1.msra.mxu0 0.0
          %545 = vmatprep.subr.mxu0 0.0
          %546 = vmatpush1.msra.mxu0 0.0
          %547 = vmatprep.subr.mxu0 0.0
          %548 = vmatpush1.msra.mxu0 0.0
          %549 = vmatprep.subr.mxu0 0.0
          %550 = vmatpush1.msra.mxu0 0.0
          %551 = vmatprep.subr.mxu0 0.0
          %552 = vmatpush1.msra.mxu0 0.0
          %553 = vmatprep.subr.mxu0 0.0
          %554 = vmatpush1.msra.mxu0 0.0
          %555 = vmatprep.subr.mxu0 0.0
          %556 = vmatpush1.msra.mxu0 0.0
          %557 = vmatprep.subr.mxu0 0.0
          %558 = vmatpush1.msra.mxu0 0.0
          %559 = vmatprep.subr.mxu0 0.0
          %560 = vmatpush1.msra.mxu0 0.0
          %561 = vmatprep.subr.mxu0 0.0
          %562 = vmatpush1.msra.mxu0 0.0
          %563 = vmatprep.mubr.f32.mxu0 0.0
          %564 = vmatmul.mubr.f32.gmra.mrb[0].mxu0 %v391
          %v565 = vpop.f32.mrb[0].mxu0
          %v566 = vadd.f32 0.0, %v565
          %v567 = vpop.f32.mrb[0].mxu0
          %568 = vdwg.mxu0
          %v569 = vld [vmem:[#allocation2] sm:$0xff]
          %vm570 = vcmask 64512
          %v572 = vsel %vm570, %v494, 0
          %574 = vmatprep.subr.mxu0 0.0
          %575 = vmatpush1.msra.mxu0 %v566
          %576 = vmatprep.subr.mxu0 0.0
          %577 = vmatpush1.msra.mxu0 0.0
          %578 = vmatprep.subr.mxu0 0.0
          %579 = vmatpush1.msra.mxu0 0.0
          %580 = vmatprep.subr.mxu0 0.0
          %581 = vmatpush1.msra.mxu0 0.0
          %582 = vmatprep.subr.mxu0 0.0
          %583 = vmatpush1.msra.mxu0 0.0
          %584 = vmatprep.subr.mxu0 0.0
          %585 = vmatpush1.msra.mxu0 0.0
          %586 = vmatprep.subr.mxu0 0.0
          %587 = vmatpush1.msra.mxu0 0.0
          %588 = vmatprep.subr.mxu0 0.0
          %589 = vmatpush1.msra.mxu0 0.0
          %590 = vmatprep.subr.mxu0 0.0
          %591 = vmatpush1.msra.mxu0 0.0
          %592 = vmatprep.subr.mxu0 0.0
          %593 = vmatpush1.msra.mxu0 0.0
          %594 = vmatprep.subr.mxu0 0.0
          %595 = vmatpush1.msra.mxu0 0.0
          %596 = vmatprep.subr.mxu0 0.0
          %597 = vmatpush1.msra.mxu0 0.0
          %598 = vmatprep.subr.mxu0 0.0
          %599 = vmatpush1.msra.mxu0 0.0
          %600 = vmatprep.subr.mxu0 0.0
          %601 = vmatpush1.msra.mxu0 0.0
          %602 = vmatprep.subr.mxu0 0.0
          %603 = vmatpush1.msra.mxu0 0.0
          %604 = vmatprep.subr.mxu0 0.0
          %605 = vmatpush1.msra.mxu0 0.0
          %606 = vmatprep.subr.mxu0 0.0
          %607 = vmatpush1.msra.mxu0 0.0
          %608 = vmatprep.subr.mxu0 0.0
          %609 = vmatpush1.msra.mxu0 0.0
          %610 = vmatprep.subr.mxu0 0.0
          %611 = vmatpush1.msra.mxu0 0.0
          %612 = vmatprep.subr.mxu0 0.0
          %613 = vmatpush1.msra.mxu0 0.0
          %614 = vmatprep.subr.mxu0 0.0
          %615 = vmatpush1.msra.mxu0 0.0
          %616 = vmatprep.subr.mxu0 0.0
          %617 = vmatpush1.msra.mxu0 0.0
          %618 = vmatprep.subr.mxu0 0.0
          %619 = vmatpush1.msra.mxu0 0.0
          %620 = vmatprep.subr.mxu0 0.0
          %621 = vmatpush1.msra.mxu0 0.0
          %622 = vmatprep.subr.mxu0 0.0
          %623 = vmatpush1.msra.mxu0 0.0
          %624 = vmatprep.subr.mxu0 0.0
          %625 = vmatpush1.msra.mxu0 0.0
          %626 = vmatprep.subr.mxu0 0.0
          %627 = vmatpush1.msra.mxu0 0.0
          %628 = vmatprep.subr.mxu0 0.0
          %629 = vmatpush1.msra.mxu0 0.0
          %630 = vmatprep.subr.mxu0 0.0
          %631 = vmatpush1.msra.mxu0 0.0
          %632 = vmatprep.subr.mxu0 0.0
          %633 = vmatpush1.msra.mxu0 0.0
          %634 = vmatprep.subr.mxu0 0.0
          %635 = vmatpush1.msra.mxu0 0.0
          %636 = vmatprep.subr.mxu0 0.0
          %637 = vmatpush1.msra.mxu0 0.0
          %638 = vmatprep.mubr.f32.mxu0 0.0
          %639 = vmatmul.mubr.f32.gmra.mrb[0].mxu0 %v572
          %v640 = vpop.f32.mrb[0].mxu0
          %v641 = vadd.f32 0.0, %v640
          %v642 = vpop.f32.mrb[0].mxu0
          %643 = vdwg.mxu0
          %v644 = vadd.f32 %v569, %v641
          %645 = vst.msk [vmem:[#allocation2] sm:$0xff] %vm386, %v644
        $region72: #{tpu_custom_call.1} parent=43 // pred_fallthru
          _
        // Predicated region
        $region73: #{tpu_custom_call.1} parent=43 // pred_check
          %p646 = pneg %p374
        $region74: #{tpu_custom_call.1} parent=43 // pred_check_branch
          %648 = sbr.rel (%p646) target = $region76
        $region75: #{tpu_custom_call.1} parent=43 // pred_region
          %v649 = vld [vmem:[%s319] sm:$0xff]
          %v650 = vld [vmem:[#allocation2] sm:$0xff]
          %v651 = vxor.u32 %v650, 2147483648
          %v652 = vmul.f32 %v651, 1.442695
          %v653 = vpow.pop %v652
          %v654 = vadd.f32 %v653, 1.0
          %v655 = vrcp.pop %v654
          %v656 = vmul.f32 1.0, %v655
          %v657 = vmul.f32 %v650, %v656
          %v658 = vld [vmem:[#allocation11] sm:$0xff]
          %v659 = vld [vmem:[#allocation11 + $0x8] sm:$0xff]
          %v660 = vld [vmem:[#allocation11 + $0x10] sm:$0xff]
          %v661 = vld [vmem:[#allocation11 + $0x18] sm:$0xff]
          %vm662 = vcmask 261120
          %v664 = vsel %vm662, %v657, 0
          %666 = vmatprep.subr.mxu0 0.0
          %667 = vmatpush1.msra.mxu0 %v658
          %668 = vmatprep.subr.mxu0 0.0
          %669 = vmatpush1.msra.mxu0 %v659
          %670 = vmatprep.subr.mxu0 0.0
          %671 = vmatpush1.msra.mxu0 %v660
          %672 = vmatprep.subr.mxu0 0.0
          %673 = vmatpush1.msra.mxu0 %v661
          %674 = vmatprep.subr.mxu0 0.0
          %675 = vmatpush1.msra.mxu0 0.0
          %676 = vmatprep.subr.mxu0 0.0
          %677 = vmatpush1.msra.mxu0 0.0
          %678 = vmatprep.subr.mxu0 0.0
          %679 = vmatpush1.msra.mxu0 0.0
          %680 = vmatprep.subr.mxu0 0.0
          %681 = vmatpush1.msra.mxu0 0.0
          %682 = vmatprep.subr.mxu0 0.0
          %683 = vmatpush1.msra.mxu0 0.0
          %684 = vmatprep.subr.mxu0 0.0
          %685 = vmatpush1.msra.mxu0 0.0
          %686 = vmatprep.subr.mxu0 0.0
          %687 = vmatpush1.msra.mxu0 0.0
          %688 = vmatprep.subr.mxu0 0.0
          %689 = vmatpush1.msra.mxu0 0.0
          %690 = vmatprep.subr.mxu0 0.0
          %691 = vmatpush1.msra.mxu0 0.0
          %692 = vmatprep.subr.mxu0 0.0
          %693 = vmatpush1.msra.mxu0 0.0
          %694 = vmatprep.subr.mxu0 0.0
          %695 = vmatpush1.msra.mxu0 0.0
          %696 = vmatprep.subr.mxu0 0.0
          %697 = vmatpush1.msra.mxu0 0.0
          %698 = vmatprep.subr.mxu0 0.0
          %699 = vmatpush1.msra.mxu0 0.0
          %700 = vmatprep.subr.mxu0 0.0
          %701 = vmatpush1.msra.mxu0 0.0
          %702 = vmatprep.subr.mxu0 0.0
          %703 = vmatpush1.msra.mxu0 0.0
          %704 = vmatprep.subr.mxu0 0.0
          %705 = vmatpush1.msra.mxu0 0.0
          %706 = vmatprep.subr.mxu0 0.0
          %707 = vmatpush1.msra.mxu0 0.0
          %708 = vmatprep.subr.mxu0 0.0
          %709 = vmatpush1.msra.mxu0 0.0
          %710 = vmatprep.subr.mxu0 0.0
          %711 = vmatpush1.msra.mxu0 0.0
          %712 = vmatprep.subr.mxu0 0.0
          %713 = vmatpush1.msra.mxu0 0.0
          %714 = vmatprep.subr.mxu0 0.0
          %715 = vmatpush1.msra.mxu0 0.0
          %716 = vmatprep.subr.mxu0 0.0
          %717 = vmatpush1.msra.mxu0 0.0
          %718 = vmatprep.subr.mxu0 0.0
          %719 = vmatpush1.msra.mxu0 0.0
          %720 = vmatprep.subr.mxu0 0.0
          %721 = vmatpush1.msra.mxu0 0.0
          %722 = vmatprep.subr.mxu0 0.0
          %723 = vmatpush1.msra.mxu0 0.0
          %724 = vmatprep.subr.mxu0 0.0
          %725 = vmatpush1.msra.mxu0 0.0
          %726 = vmatprep.subr.mxu0 0.0
          %727 = vmatpush1.msra.mxu0 0.0
          %728 = vmatprep.subr.mxu0 0.0
          %729 = vmatpush1.msra.mxu0 0.0
          %730 = vmatprep.mubr.f32.mxu0 0.0
          %731 = vmatmul.mubr.f32.gmra.mrb[0].mxu0 %v664
          %v732 = vpop.f32.mrb[0].mxu0
          %v733 = vadd.f32 0.0, %v732
          %v734 = vpop.f32.mrb[0].mxu0
          %735 = vdwg.mxu0
          %v736 = vld [vmem:[#allocation9] sm:$0xff]
          %v737 = vld [vmem:[#allocation9 + $0x8] sm:$0xff]
          %v738 = vld [vmem:[#allocation9 + $0x10] sm:$0xff]
          %v739 = vld [vmem:[#allocation9 + $0x18] sm:$0xff]
          %v741 = vsel %vm662, %v649, 0
          %743 = vmatprep.subr.mxu0 0.0
          %744 = vmatpush1.msra.mxu0 %v736
          %745 = vmatprep.subr.mxu0 0.0
          %746 = vmatpush1.msra.mxu0 %v737
          %747 = vmatprep.subr.mxu0 0.0
          %748 = vmatpush1.msra.mxu0 %v738
          %749 = vmatprep.subr.mxu0 0.0
          %750 = vmatpush1.msra.mxu0 %v739
          %751 = vmatprep.subr.mxu0 0.0
          %752 = vmatpush1.msra.mxu0 0.0
          %753 = vmatprep.subr.mxu0 0.0
          %754 = vmatpush1.msra.mxu0 0.0
          %755 = vmatprep.subr.mxu0 0.0
          %756 = vmatpush1.msra.mxu0 0.0
          %757 = vmatprep.subr.mxu0 0.0
          %758 = vmatpush1.msra.mxu0 0.0
          %759 = vmatprep.subr.mxu0 0.0
          %760 = vmatpush1.msra.mxu0 0.0
          %761 = vmatprep.subr.mxu0 0.0
          %762 = vmatpush1.msra.mxu0 0.0
          %763 = vmatprep.subr.mxu0 0.0
          %764 = vmatpush1.msra.mxu0 0.0
          %765 = vmatprep.subr.mxu0 0.0
          %766 = vmatpush1.msra.mxu0 0.0
          %767 = vmatprep.subr.mxu0 0.0
          %768 = vmatpush1.msra.mxu0 0.0
          %769 = vmatprep.subr.mxu0 0.0
          %770 = vmatpush1.msra.mxu0 0.0
          %771 = vmatprep.subr.mxu0 0.0
          %772 = vmatpush1.msra.mxu0 0.0
          %773 = vmatprep.subr.mxu0 0.0
          %774 = vmatpush1.msra.mxu0 0.0
          %775 = vmatprep.subr.mxu0 0.0
          %776 = vmatpush1.msra.mxu0 0.0
          %777 = vmatprep.subr.mxu0 0.0
          %778 = vmatpush1.msra.mxu0 0.0
          %779 = vmatprep.subr.mxu0 0.0
          %780 = vmatpush1.msra.mxu0 0.0
          %781 = vmatprep.subr.mxu0 0.0
          %782 = vmatpush1.msra.mxu0 0.0
          %783 = vmatprep.subr.mxu0 0.0
          %784 = vmatpush1.msra.mxu0 0.0
          %785 = vmatprep.subr.mxu0 0.0
          %786 = vmatpush1.msra.mxu0 0.0
          %787 = vmatprep.subr.mxu0 0.0
          %788 = vmatpush1.msra.mxu0 0.0
          %789 = vmatprep.subr.mxu0 0.0
          %790 = vmatpush1.msra.mxu0 0.0
          %791 = vmatprep.subr.mxu0 0.0
          %792 = vmatpush1.msra.mxu0 0.0
          %793 = vmatprep.subr.mxu0 0.0
          %794 = vmatpush1.msra.mxu0 0.0
          %795 = vmatprep.subr.mxu0 0.0
          %796 = vmatpush1.msra.mxu0 0.0
          %797 = vmatprep.subr.mxu0 0.0
          %798 = vmatpush1.msra.mxu0 0.0
          %799 = vmatprep.subr.mxu0 0.0
          %800 = vmatpush1.msra.mxu0 0.0
          %801 = vmatprep.subr.mxu0 0.0
          %802 = vmatpush1.msra.mxu0 0.0
          %803 = vmatprep.subr.mxu0 0.0
          %804 = vmatpush1.msra.mxu0 0.0
          %805 = vmatprep.subr.mxu0 0.0
          %806 = vmatpush1.msra.mxu0 0.0
          %807 = vmatprep.mubr.f32.mxu0 0.0
          %808 = vmatmul.mubr.f32.gmra.mrb[0].mxu0 %v741
          %v809 = vpop.f32.mrb[0].mxu0
          %v810 = vadd.f32 0.0, %v809
          %v811 = vpop.f32.mrb[0].mxu0
          %812 = vdwg.mxu0
          %v813 = vmul.f32 %v733, %v810
          %814 = vst.msk [vmem:[%s373] sm:$0xff] %vm662, %v813
        $region76: #{tpu_custom_call.1} parent=43 // pred_fallthru
          _
        %s815 = sand.u32 %s196, 1
        %s816 = scalar_lea.sflag [#allocation5], %s815
        %s817 = sand.u32 %s196, 1
        %s818 = smul.addr %s817, 8
        %s819 = scalar_lea.vmem [#allocation12], %s818
        // Predicated region
        $region77: #{tpu_custom_call.1} parent=43 // pred_check
          %p820 = pneg %p206
        $region78: #{tpu_custom_call.1} parent=43 // pred_check_branch
          %822 = sbr.rel (%p820) target = $region80
        $region79: #{tpu_custom_call.1} parent=43 // pred_region
          %s824 = ssub.s32 128, 128
          %825 = vsyncadd %s816, %s824
          %s826 = sadd.s32 %s33, %s32
          %s827 = smul.addr %s826, 128
          %s828 = scalar_lea.hbm %s6, %s827
          %s830 = sshll.u32 %s819, 4
          %s831 = int_to_ptr.vmem [resolvable:$true] %s830
          %833 = dma.vmem_to_hbm [thread:$0]  %s831, 128, %s828, %s816
        $region80: #{tpu_custom_call.1} parent=43 // pred_fallthru
          _
      $region44: #{tpu_custom_call.1} parent=5 // pred_fallthru
        _
      %p834 = scmp.le.s32.totalorder 2, %s22
      // Predicated region
      $region81: #{tpu_custom_call.1} parent=5 // pred_check
        %p835 = pneg %p834
      $region82: #{tpu_custom_call.1} parent=5 // pred_check_branch
        %837 = sbr.rel (%p835) target = $region84
      $region83: #{tpu_custom_call.1} parent=5 // pred_region
        %s838 = ssub.s32 %s22, 2
        // Predicated region
        $region85: #{tpu_custom_call.1} parent=83 // pred_check
          %p839 = pneg %p212
        $region86: #{tpu_custom_call.1} parent=83 // pred_check_branch
          %841 = sbr.rel (%p839) target = $region88
        $region87: #{tpu_custom_call.1} parent=83 // pred_region
          %s842 = sand.u32 %s197, 1
          %s843 = scalar_lea.sflag [#allocation5], %s842
          %s844 = sand.u32 %s197, 1
          %s845 = smul.addr %s844, 8
          %s846 = scalar_lea.vmem [#allocation12], %s845
          %847 = dma.done %s843, 128
        $region88: #{tpu_custom_call.1} parent=83 // pred_fallthru
          _
      $region84: #{tpu_custom_call.1} parent=5 // pred_fallthru
        _
    $region6: #{tpu_custom_call.1} parent=1 // loop_footer
      %s26 = sadd.s32 1, %s22
    $region7: #{tpu_custom_call.1} parent=1 // loop_footer_branch
      %21 = sbr.rel target = $region3
    $region8: #{tpu_custom_call.1} parent=1 // loop_exit
      _
    %848 = vsyncpa [#allocation4], 1
    %s849 = scalar_lea.sflag [#allocation4], 1
    %850 = vsyncpa %s849, 1
    %851 = vsyncpa [#allocation7], 1
    %s852 = scalar_lea.sflag [#allocation7], 1
    %853 = vsyncpa %s852, 1
    %854 = vsyncpa [#allocation10], 1
    %855 = vsyncpa [#allocation5], 1
    %s856 = scalar_lea.sflag [#allocation5], 1
    %857 = vsyncpa %s856, 1

</llo_original>
